<compile_context>
chip_gen: v5e
topology: v5e:2x2
jax: 0.10.0
libtpu: 0.0.40
codegen_flags: <defaults>
</compile_context>

<pallas_src>
import jax
import jax.numpy as jnp
from jax.experimental import pallas as pl
from jax.experimental.pallas import tpu as pltpu


def _scale_kernel(scale_ref, x_ref, o_ref):
    # scale_ref: SMEM (1,) f32 scalar; x_ref/o_ref: VMEM tiles (block_rows, lane)
    s = scale_ref[0].astype(x_ref.dtype)   # one scalar cast, native-dtype multiply
    o_ref[...] = x_ref[...] * s


def _xla_fallback(x: jax.Array, scale: jax.Array) -> jax.Array:
    # Used for empty inputs and element counts not divisible by 128, where a
    # pad+slice round trip would cost extra full HBM passes on a mem-bound op.
    s = scale.astype(jnp.float32).reshape(())
    return (x.astype(jnp.float32) * s).astype(x.dtype)


def scale_layer(x: jax.Array, scale: jax.Array,
                target_block_bytes: int = 6 * 1024 * 1024) -> jax.Array:
    """y = x * scale (scalar).  x: any-shape float array, scale: shape (1,)."""
    orig_shape = x.shape
    out_dtype = x.dtype

    flat = x.reshape(-1)
    n = flat.shape[0]
    if n == 0:
        return _xla_fallback(x, scale)

    itemsize = jnp.dtype(out_dtype).itemsize

    # Widest lane-dense last dim (multiple of 128) that divides n, so the
    # contiguous reshape is free.  Cap lane so the minimum legal block
    # (32 rows) still fits the per-block byte target.
    lane_cap = max(128, target_block_bytes // (32 * itemsize))
    lane = None
    for cand in (32768, 16384, 8192, 4096, 2048, 1024, 512, 256, 128):
        if cand <= lane_cap and n % cand == 0:
            lane = cand
            break
    if lane is None:
        # Not a multiple of 128: let XLA fuse it instead of paying pad+slice
        # passes over HBM.
        return _xla_fallback(x, scale)

    rows = n // lane
    x2d = flat.reshape(rows, lane)

    # ~target_block_bytes per block; row count a multiple of 32 so the block
    # shape is legal for f32/bf16/int8 sublane packing (or equals the full
    # array dim).  Ragged last block is handled by the cdiv grid + masking.
    target_rows = max(32, target_block_bytes // (lane * itemsize))
    target_rows -= target_rows % 32

    MIN_GRID_STEPS = 4  # keep both v7x TensorCores busy + real pipelining
    total_bytes = rows * lane * itemsize
    if total_bytes > (1 << 20) and rows > 32:
        cap = rows // MIN_GRID_STEPS
        cap -= cap % 32
        cap = max(cap, 32)
        block_rows = min(target_rows, cap)   # multiple of 32; >=2 grid steps
    else:
        # Small array: single block (== full dim) or target-sized blocks.
        block_rows = min(rows, target_rows)

    grid = (pl.cdiv(rows, block_rows),)

    out2d = pl.pallas_call(
        _scale_kernel,
        out_shape=jax.ShapeDtypeStruct((rows, lane), out_dtype),
        grid_spec=pltpu.PrefetchScalarGridSpec(
            num_scalar_prefetch=0,
            grid=grid,
            in_specs=[
                pl.BlockSpec(memory_space=pltpu.MemorySpace.SMEM),  # scale (1,)
                pl.BlockSpec((block_rows, lane), lambda i: (i, 0)),
            ],
            out_specs=pl.BlockSpec((block_rows, lane), lambda i: (i, 0)),
        ),
        compiler_params=pltpu.CompilerParams(
            dimension_semantics=("parallel",),
            # in+out double-buffered blocks (<= ~4x block) fit comfortably;
            # within v7x's 64 MiB physical VMEM and v5e/v6e's 128 MiB.
            vmem_limit_bytes=32 * 1024 * 1024,
        ),
        # TODO(synk): add input_output_aliases={1: 0} when the caller can
        # donate x, to drop the extra output allocation.
    )(scale.astype(jnp.float32).reshape(-1), x2d)

    return out2d.reshape(orig_shape)


if __name__ == "__main__":
    key = jax.random.PRNGKey(0)
    k1, k2, k3 = jax.random.split(key, 3)

    # NCHW input, consistent with the conv-style models this layer lives in.
    x = jax.random.normal(k1, (2, 4, 16, 16), dtype=jnp.float32)

    scale_init = jnp.array([1.0], dtype=jnp.float32)   # __init__ default
    scale_test = jnp.array([2.5], dtype=jnp.float32)

    y_init = jax.block_until_ready(scale_layer(x, scale_init))
    y_test = jax.block_until_ready(scale_layer(x, scale_test))
    assert y_init.shape == x.shape and y_init.dtype == x.dtype
    assert jnp.allclose(y_init, x * scale_init[0], atol=1e-6, rtol=1e-6)
    assert jnp.allclose(y_test, x * scale_test[0], atol=1e-6, rtol=1e-6)

    # Odd element count (not a multiple of 128) -> exercises the XLA fallback.
    x_odd = jax.random.normal(k2, (3, 5, 7, 11), dtype=jnp.float32)
    y_odd = jax.block_until_ready(scale_layer(x_odd, scale_test))
    assert jnp.allclose(y_odd, x_odd * scale_test[0], atol=1e-6, rtol=1e-6)

    # Multi-step grid with a ragged (masked) last block: force a tiny block
    # target so rows > block_rows even at this small test size.
    x_rag = jax.random.normal(k3, (7, 8, 33, 16), dtype=jnp.float32)
    y_rag = jax.block_until_ready(
        scale_layer(x_rag, scale_test, target_block_bytes=32 * 1024))
    assert jnp.allclose(y_rag, x_rag * scale_test[0], atol=1e-6, rtol=1e-6)

    # Empty-input guard.
    x_empty = jnp.zeros((0, 4, 16, 16), dtype=jnp.float32)
    y_empty = jax.block_until_ready(scale_layer(x_empty, scale_test))
    assert y_empty.shape == x_empty.shape

    print("KERNEL_OK")
</pallas_src>

<mosaic_0001>
module attributes {stable_mosaic.version = 11 : i64} {
  func.func @_scale_kernel(%arg0: i32, %arg1: memref<1xf32, #tpu.memory_space<smem>>, %arg2: memref<1x2048xf32, #tpu.memory_space<vmem>>, %arg3: memref<1x2048xf32, #tpu.memory_space<vmem>>) attributes {dimension_semantics = [#tpu.dimension_semantics<parallel>], iteration_bounds = array<i64: 1>, scalar_prefetch = 0 : i64, scratch_operands = 0 : i64, tpu.core_type = #tpu.core_type<tc>, window_params = [{transform_indices = @transform_0, window_bounds = array<i64: 1>}, {transform_indices = @transform_1, window_bounds = array<i64: 1, 2048>}, {transform_indices = @transform_2, window_bounds = array<i64: 1, 2048>}]} {
    %c0 = arith.constant 0 : index
    %0 = memref.load %arg1[%c0] : memref<1xf32, #tpu.memory_space<smem>>
    %c0_0 = arith.constant 0 : index
    %c0_1 = arith.constant 0 : index
    %1 = vector.load %arg2[%c0_0, %c0_1] : memref<1x2048xf32, #tpu.memory_space<vmem>>, vector<1x2048xf32>
    %2 = vector.broadcast %0 : f32 to vector<1x2048xf32>
    %3 = arith.mulf %1, %2 : vector<1x2048xf32>
    %c0_2 = arith.constant 0 : index
    %c0_3 = arith.constant 0 : index
    %4 = vector.load %arg3[%c0_2, %c0_3] : memref<1x2048xf32, #tpu.memory_space<vmem>>, vector<1x2048xf32>
    tpu.vector_store %arg3[%c0_2, %c0_3], %3 {strides = array<i32>} : memref<1x2048xf32, #tpu.memory_space<vmem>>, vector<1x2048xf32>,
    return
  }
  func.func @transform_0(%arg0: i32) -> i32 {
    %c0_i32 = arith.constant 0 : i32
    %c0_i32_0 = arith.constant 0 : i32
    return %c0_i32 : i32
  }
  func.func @transform_1(%arg0: i32) -> (i32, i32) {
    %c0_i32 = arith.constant 0 : i32
    %c0_i32_0 = arith.constant 0 : i32
    return %arg0, %c0_i32 : i32, i32
  }
  func.func @transform_2(%arg0: i32) -> (i32, i32) {
    %c0_i32 = arith.constant 0 : i32
    %c0_i32_0 = arith.constant 0 : i32
    return %arg0, %c0_i32 : i32, i32
  }
}

</mosaic_0001>

<llo_original>
// kernel: tpu_custom_call.1
$region0: #{tpu_custom_call.1}
  #allocation0 [shape = 'u32[]', space=smem, size = 0x4, offset = 0x4, fixed_abs, tag = 'smem constant byte address 0x4 - core index']
  #allocation1 [shape = 'u32[72,128]{1,0:T(1,128)}', space=vmem, size = 0x9000, scoped, tag = 'internal scratch']
  #allocation2 [shape = 'f32[1]{0:T(128)S(6)}', space=smem, size = 0x200, scoped, tag = 'scoped memory for tpu_custom_call.1']
  %s0 = inlined_call_operand.<no memory space> [shape: f32[1], index: 0, kind: input, shape index: {}]
  %s1 = inlined_call_operand.hbm [shape: f32[1,2048], index: 1, kind: input, shape index: {}]
  %s2 = inlined_call_operand.hbm [shape: f32[1,2048], index: 2, kind: output, shape index: {}]
  %s3 = sld [smem:[#allocation0]]
  $region22: #{tpu_custom_call.1} parent=0
    _
  %s5 = ssub.s32 1, %s3
  %s6 = scalar_select 0, %s5, %s3
  %7 = sst [smem:[#allocation2]] %s0
  $region1: #{tpu_custom_call.1} parent=0
    #allocation3 [shape = 'u8[8192]{0}', space=vmem, size = 0x2000, scoped, tag = 'input window, operand 1, single buffered']
    #allocation4 [shape = 's32[1]{0}', space=sflag, size = 0x4, scoped, tag = 'scoped memory for tpu_custom_call.1']
    #allocation5 [shape = 's32[1]{0}', space=sflag, size = 0x4, scoped, tag = 'scoped memory for tpu_custom_call.1']
    #allocation6 [shape = 'u8[8192]{0}', space=vmem, size = 0x2000, scoped, tag = 'output window, operand 0, single buffered']
    %8 = vsyncpa [#allocation4], 0
    %9 = vsyncpa [#allocation5], 0
    // Predicated region
    $region2: #{tpu_custom_call.1} parent=1 // pred_check
      _
    $region3: #{tpu_custom_call.1} parent=1 // pred_check_branch
      %11 = sbr.rel (0) target = $region5
    $region4: #{tpu_custom_call.1} parent=1 // pred_region
      _
    $region5: #{tpu_custom_call.1} parent=1 // pred_fallthru
      _
    // Predicated region
    $region6: #{tpu_custom_call.1} parent=1 // pred_check
      _
    $region7: #{tpu_custom_call.1} parent=1 // pred_check_branch
      %13 = sbr.rel (0) target = $region9
    $region8: #{tpu_custom_call.1} parent=1 // pred_region
      %15 = vsyncadd [#allocation4], 0
      %s17 = sshll.u32 %s1, 4
      %s18 = int_to_ptr.hbm [resolvable:$true] %s17
      %s19 = sshll.u32 [#allocation3], 4
      %s20 = int_to_ptr.vmem [resolvable:$true] %s19
      %22 = dma.hbm_to_vmem [thread:$0]  %s18, 256, %s20, [#allocation4]
    $region9: #{tpu_custom_call.1} parent=1 // pred_fallthru
      _
    // Predicated region
    $region10: #{tpu_custom_call.1} parent=1 // pred_check
      _
    $region11: #{tpu_custom_call.1} parent=1 // pred_check_branch
      %24 = sbr.rel (0) target = $region13
    $region12: #{tpu_custom_call.1} parent=1 // pred_region
      %26 = dma.done [#allocation4], 256
    $region13: #{tpu_custom_call.1} parent=1 // pred_fallthru
      _
    %s27 = sld [smem:[#allocation2]]
    %v28 = vld [vmem:[#allocation3] sm:$0xff]
    %v29 = vld [vmem:[#allocation3 + $0x8] sm:$0xff]
    %v30 = vstv %s27
    %v31 = vmul.f32 %v28, %v30
    %v32 = vmul.f32 %v29, %v30
    %33 = vst [vmem:[#allocation6] sm:$0xff] %v31
    %34 = vst [vmem:[#allocation6 + $0x8] sm:$0xff] %v32
    // Predicated region
    $region14: #{tpu_custom_call.1} parent=1 // pred_check
      _
    $region15: #{tpu_custom_call.1} parent=1 // pred_check_branch
      %36 = sbr.rel (0) target = $region17
    $region16: #{tpu_custom_call.1} parent=1 // pred_region
      %38 = vsyncadd [#allocation5], 0
      %s40 = sshll.u32 [#allocation6], 4
      %s41 = int_to_ptr.vmem [resolvable:$true] %s40
      %s42 = sshll.u32 %s2, 4
      %s43 = int_to_ptr.hbm [resolvable:$true] %s42
      %45 = dma.vmem_to_hbm [thread:$0]  %s41, 256, %s43, [#allocation5]
    $region17: #{tpu_custom_call.1} parent=1 // pred_fallthru
      _
    // Predicated region
    $region18: #{tpu_custom_call.1} parent=1 // pred_check
      _
    $region19: #{tpu_custom_call.1} parent=1 // pred_check_branch
      %47 = sbr.rel (0) target = $region21
    $region20: #{tpu_custom_call.1} parent=1 // pred_region
      %49 = dma.done [#allocation5], 256
    $region21: #{tpu_custom_call.1} parent=1 // pred_fallthru
      _
    %50 = vsyncpa [#allocation4], 1
    %51 = vsyncpa [#allocation5], 1

</llo_original>
